<compile_context>
chip_gen: v6e
topology: v6e:2x2x1
jax: 0.10.0
libtpu: 0.0.40
codegen_flags: <defaults>
</compile_context>

<pallas_src>
import functools

import jax
import jax.numpy as jnp
from jax.experimental import pallas as pl
from jax.experimental.pallas import tpu as pltpu

LANE = 128      # vreg lane width
SUBLANE = 8     # f32 sublane width


def _round_up(x, m):
    return (x + m - 1) // m * m


def _mlp_kernel(x_ref, *refs, num_layers):
    # x_ref: [TM, Din] (raw, unpadded feature width)
    # refs : w0, b0, w1, b1, ..., o_ref
    #   w_l: [P_in_l, P_out_l]   b_l: [1, P_out_l]   o_ref: [1, TM]
    o_ref = refs[-1]
    wb = refs[:-1]
    h = x_ref[...]
    for l in range(num_layers):                       # static unroll over layers
        w = wb[2 * l][...]
        b = wb[2 * l + 1][...]
        lhs = h if h.dtype == w.dtype else h.astype(w.dtype)   # bf16-weight path
        h = jnp.dot(lhs, w, preferred_element_type=jnp.float32) + b
        if l < num_layers - 1:
            h = jnp.maximum(h, 0.0)                   # ReLU on hidden layers only
    # Real output is column 0 (Dout = 1).  Emit it as a lane-dense [1, TM] row via
    # an in-kernel transpose so the HBM writeback is TM*4 B instead of TM*128*4 B.
    o_ref[...] = jnp.transpose(h)[0:1, :].astype(o_ref.dtype)


def init_params(key, input_size, hidden_layers):
    """Deterministic init mirroring nn.Linear default (uniform +-1/sqrt(fan_in)).
    Weights stored as [in, out] (transposed from PyTorch's [out, in])."""
    sizes = [input_size] + list(hidden_layers) + [1]
    params = []
    for i in range(len(sizes) - 1):
        fan_in, fan_out = sizes[i], sizes[i + 1]
        key, kw, kb = jax.random.split(key, 3)
        bound = 1.0 / jnp.sqrt(jnp.float32(fan_in))
        w = jax.random.uniform(kw, (fan_in, fan_out), jnp.float32, -bound, bound)
        b = jax.random.uniform(kb, (fan_out,), jnp.float32, -bound, bound)
        params.append((w, b))
    return params


def pack_params(params, param_dtype=jnp.float32):
    """Per-layer zero-padding, done ONCE.  Each layer's OUT dim is padded to its own
    multiple of 128 (lane width); each layer's IN dim matches the previous layer's
    padded OUT width (layer 0 keeps the raw input_size so x needs no padding).
    Padding is exact: padded weight columns and biases are zero, so padded lanes
    remain exactly zero through bias-add and ReLU."""
    dims = [params[0][0].shape[0]] + [w.shape[1] for (w, _) in params]
    packed = []
    p_in = dims[0]                         # layer-0 input stays at the raw width
    for (w, b) in params:
        fan_in, fan_out = w.shape
        p_out = _round_up(fan_out, LANE)
        wp = jnp.zeros((p_in, p_out), param_dtype)
        wp = wp.at[:fan_in, :fan_out].set(w.astype(param_dtype))
        bp = jnp.zeros((1, p_out), jnp.float32)
        bp = bp.at[0, :fan_out].set(b.astype(jnp.float32))   # bias/epilogue stay f32
        packed.append((wp, bp))
        p_in = p_out
    return packed, dims


def _vmem_limit_bytes(TM, Din, packed_params):
    """Explicit scoped-VMEM budget: weights/biases + double-buffered x tile and
    output row + a few activation-tile working copies, with generous headroom,
    clamped to fit every generation (v7x has 64 MiB physical)."""
    wb_bytes = sum(int(w.size) * w.dtype.itemsize + int(b.size) * b.dtype.itemsize
                   for (w, b) in packed_params)
    max_p = max(w.shape[1] for (w, _) in packed_params)
    act_bytes = TM * max_p * 4                    # widest f32 activation tile
    io_bytes = 2 * TM * Din * 4 + 2 * TM * 4      # double-buffered x tile + out row
    est = 2 * wb_bytes + 4 * act_bytes + io_bytes
    return int(min(max(2 * est, 16 << 20), 48 << 20))


def feedforward_nn(x, packed_params, dims, *, batch_tile=1024, single_tile_rows=256):
    """Forward pass of FeedForwardNN.  x: [B, input_size] -> [B, 1]."""
    B, Din = x.shape
    assert Din == dims[0]
    L = len(packed_params)
    flat = [a for wb in packed_params for a in wb]      # w0, b0, w1, b1, ...
    kernel = functools.partial(_mlp_kernel, num_layers=L)
    x = x.astype(jnp.float32)

    if B <= single_tile_rows:
        # Single-tile, no-grid path: whole (tiny) problem resident in VMEM, raw x
        # streamed in, only a [1, B] result streamed out.  (For very small B the
        # launch itself dominates; we still use Pallas to keep one code path.)
        vmem = pl.BlockSpec(memory_space=pltpu.MemorySpace.VMEM)
        out = pl.pallas_call(
            kernel,
            out_shape=jax.ShapeDtypeStruct((1, B), jnp.float32),
            in_specs=[vmem] * (1 + 2 * L),
            out_specs=vmem,
        )(x, *flat)
        return out.reshape(B, 1)

    # Batch-tiled path: x streams in raw [TM, Din] tiles (no HBM padding copy);
    # weights/biases are whole-array blocks with a constant index_map so they stay
    # VMEM-resident across batch tiles; output is one lane-dense [1, TM] row per
    # tile.  TM is a multiple of 128 (lane-dense output) and we keep >= 2 grid
    # steps so v7x's 2 TensorCores both get work ("parallel" axis).
    TM = min(_round_up(batch_tile, LANE), _round_up(pl.cdiv(B, 2), LANE))
    n_tiles = pl.cdiv(B, TM)

    wb_specs = []
    for (wp, bp) in packed_params:
        wb_specs.append(pl.BlockSpec(wp.shape, lambda i: (0, 0)))
        wb_specs.append(pl.BlockSpec(bp.shape, lambda i: (0, 0)))

    out = pl.pallas_call(
        kernel,
        out_shape=jax.ShapeDtypeStruct((1, n_tiles * TM), jnp.float32),
        grid=(n_tiles,),
        in_specs=[pl.BlockSpec((TM, Din), lambda i: (i, 0))] + wb_specs,
        out_specs=pl.BlockSpec((1, TM), lambda i: (0, i)),
        compiler_params=pltpu.CompilerParams(
            dimension_semantics=("parallel",),   # shards tiles across v7x's 2 TCs
            vmem_limit_bytes=_vmem_limit_bytes(TM, Din, packed_params),
        ),
    )(x, *flat)
    # The last x tile may be partial (Pallas clamps the DMA; extra rows are garbage)
    # and padded rows carry bias-propagated values -- always slice before any use.
    return out[0, :B].reshape(B, 1)


def _reference(x, params):
    h = x
    for i, (w, b) in enumerate(params):
        h = h @ w + b
        if i < len(params) - 1:
            h = jnp.maximum(h, 0.0)
    return h


if __name__ == "__main__":
    input_size = 32
    hidden_layers = [64, 32]

    key = jax.random.PRNGKey(0)
    key, kx1, kx2 = jax.random.split(key, 3)
    params = init_params(key, input_size, hidden_layers)
    packed, dims = pack_params(params)   # pack_params(..., param_dtype=jnp.bfloat16) for big widths on v6e/v7x

    # Small batch -> single-tile (no-grid) path.
    x_small = jax.random.normal(kx1, (8, input_size), dtype=jnp.float32)
    out_small = jax.block_until_ready(feedforward_nn(x_small, packed, dims))
    assert out_small.shape == (8, 1)
    assert jnp.allclose(out_small, _reference(x_small, params), atol=1e-4, rtol=1e-4)

    # Larger batch -> batch-tiled path (2 "parallel" grid steps of 512 rows).
    x_big = jax.random.normal(kx2, (1000, input_size), dtype=jnp.float32)
    out_big = jax.block_until_ready(feedforward_nn(x_big, packed, dims))
    assert out_big.shape == (1000, 1)
    assert jnp.allclose(out_big, _reference(x_big, params), atol=1e-4, rtol=1e-4)

    print("KERNEL_OK")
</pallas_src>

<mosaic_0001>
module attributes {stable_mosaic.version = 11 : i64} {
  func.func @_mlp_kernel(%arg0: memref<8x32xf32, #tpu.memory_space<vmem>>, %arg1: memref<32x128xf32, #tpu.memory_space<vmem>>, %arg2: memref<1x128xf32, #tpu.memory_space<vmem>>, %arg3: memref<128x128xf32, #tpu.memory_space<vmem>>, %arg4: memref<1x128xf32, #tpu.memory_space<vmem>>, %arg5: memref<128x128xf32, #tpu.memory_space<vmem>>, %arg6: memref<1x128xf32, #tpu.memory_space<vmem>>, %arg7: memref<1x8xf32, #tpu.memory_space<vmem>>) attributes {dimension_semantics = [], scalar_prefetch = 0 : i64, scratch_operands = 0 : i64, tpu.core_type = #tpu.core_type<tc>} {
    %c0 = arith.constant 0 : index
    %c0_0 = arith.constant 0 : index
    %0 = vector.load %arg0[%c0, %c0_0] : memref<8x32xf32, #tpu.memory_space<vmem>>, vector<8x32xf32>
    %c0_1 = arith.constant 0 : index
    %c0_2 = arith.constant 0 : index
    %1 = vector.load %arg1[%c0_1, %c0_2] : memref<32x128xf32, #tpu.memory_space<vmem>>, vector<32x128xf32>
    %c0_3 = arith.constant 0 : index
    %c0_4 = arith.constant 0 : index
    %2 = vector.load %arg2[%c0_3, %c0_4] : memref<1x128xf32, #tpu.memory_space<vmem>>, vector<1x128xf32>
    %cst = arith.constant dense<0.000000e+00> : vector<8x128xf32>
    %3 = tpu.matmul %0, %1, %cst {dimension_numbers = #tpu.dot_dimension_numbers<[1], [0], [0], [1], [0, 0, 1, 1], [], []>} : vector<8x32xf32>, vector<32x128xf32>, vector<8x128xf32> -> vector<8x128xf32>
    %4 = vector.broadcast %2 : vector<1x128xf32> to vector<8x128xf32>
    %5 = arith.addf %3, %4 : vector<8x128xf32>
    %cst_5 = arith.constant 0.000000e+00 : f32
    %6 = vector.broadcast %cst_5 : f32 to vector<8x128xf32>
    %7 = arith.maximumf %5, %6 : vector<8x128xf32>
    %c0_6 = arith.constant 0 : index
    %c0_7 = arith.constant 0 : index
    %8 = vector.load %arg3[%c0_6, %c0_7] : memref<128x128xf32, #tpu.memory_space<vmem>>, vector<128x128xf32>
    %c0_8 = arith.constant 0 : index
    %c0_9 = arith.constant 0 : index
    %9 = vector.load %arg4[%c0_8, %c0_9] : memref<1x128xf32, #tpu.memory_space<vmem>>, vector<1x128xf32>
    %cst_10 = arith.constant dense<0.000000e+00> : vector<8x128xf32>
    %10 = tpu.matmul %7, %8, %cst_10 {dimension_numbers = #tpu.dot_dimension_numbers<[1], [0], [0], [1], [0, 0, 1, 1], [], []>} : vector<8x128xf32>, vector<128x128xf32>, vector<8x128xf32> -> vector<8x128xf32>
    %11 = vector.broadcast %9 : vector<1x128xf32> to vector<8x128xf32>
    %12 = arith.addf %10, %11 : vector<8x128xf32>
    %cst_11 = arith.constant 0.000000e+00 : f32
    %13 = vector.broadcast %cst_11 : f32 to vector<8x128xf32>
    %14 = arith.maximumf %12, %13 : vector<8x128xf32>
    %c0_12 = arith.constant 0 : index
    %c0_13 = arith.constant 0 : index
    %15 = vector.load %arg5[%c0_12, %c0_13] : memref<128x128xf32, #tpu.memory_space<vmem>>, vector<128x128xf32>
    %c0_14 = arith.constant 0 : index
    %c0_15 = arith.constant 0 : index
    %16 = vector.load %arg6[%c0_14, %c0_15] : memref<1x128xf32, #tpu.memory_space<vmem>>, vector<1x128xf32>
    %cst_16 = arith.constant dense<0.000000e+00> : vector<8x128xf32>
    %17 = tpu.matmul %14, %15, %cst_16 {dimension_numbers = #tpu.dot_dimension_numbers<[1], [0], [0], [1], [0, 0, 1, 1], [], []>} : vector<8x128xf32>, vector<128x128xf32>, vector<8x128xf32> -> vector<8x128xf32>
    %18 = vector.broadcast %16 : vector<1x128xf32> to vector<8x128xf32>
    %19 = arith.addf %17, %18 : vector<8x128xf32>
    %20 = tpu.transpose %19, [1, 0] : vector<8x128xf32> -> vector<128x8xf32>
    %21 = vector.extract_strided_slice %20 {offsets = [0, 0], sizes = [1, 8], strides = [1, 1]} : vector<128x8xf32> to vector<1x8xf32>
    %c0_17 = arith.constant 0 : index
    %c0_18 = arith.constant 0 : index
    %22 = vector.load %arg7[%c0_17, %c0_18] : memref<1x8xf32, #tpu.memory_space<vmem>>, vector<1x8xf32>
    tpu.vector_store %arg7[%c0_17, %c0_18], %21 {strides = array<i32>} : memref<1x8xf32, #tpu.memory_space<vmem>>, vector<1x8xf32>,
    return
  }
}

</mosaic_0001>

<llo_original>
// kernel: tpu_custom_call.1
$region0: #{tpu_custom_call.1}
  #allocation0 [shape = 'u32[]', space=smem, size = 0x4, offset = 0x4, fixed_abs, tag = 'smem constant byte address 0x4 - core index']
  #allocation1 [shape = 'u32[144,128]{1,0:T(1,128)}', space=vmem, size = 0x12000, scoped, tag = 'internal scratch']
  %s0 = inlined_call_operand.hbm [shape: f32[8,32], index: 0, kind: input, shape index: {}]
  %s1 = inlined_call_operand.hbm [shape: f32[32,128], index: 1, kind: input, shape index: {}]
  %s2 = inlined_call_operand.vmem [shape: f32[1,128], index: 2, kind: input, shape index: {}]
  %s3 = inlined_call_operand.hbm [shape: f32[128,128], index: 3, kind: input, shape index: {}]
  %s4 = inlined_call_operand.vmem [shape: f32[1,128], index: 4, kind: input, shape index: {}]
  %s5 = inlined_call_operand.hbm [shape: f32[128,128], index: 5, kind: input, shape index: {}]
  %s6 = inlined_call_operand.vmem [shape: f32[1,128], index: 6, kind: input, shape index: {}]
  %s7 = inlined_call_operand.hbm [shape: f32[1,8], index: 7, kind: output, shape index: {}]
  %s8 = sld [smem:[#allocation0]]
  $region54: #{tpu_custom_call.1} parent=0
    _
  %s10 = ssub.s32 1, %s8
  %s11 = scalar_select 0, %s10, %s8
  $region1: #{tpu_custom_call.1} parent=0
    #allocation2 [shape = 'u8[4096]{0}', space=vmem, size = 0x1000, scoped, tag = 'input window, operand 0, single buffered']
    #allocation3 [shape = 's32[1]{0}', space=sflag, size = 0x4, scoped, tag = 'scoped memory for tpu_custom_call.1']
    #allocation4 [shape = 's32[1]{0}', space=sflag, size = 0x4, scoped, tag = 'scoped memory for tpu_custom_call.1']
    #allocation5 [shape = 'u8[16384]{0}', space=vmem, size = 0x4000, scoped, tag = 'input window, operand 1, single buffered']
    #allocation6 [shape = 's32[1]{0}', space=sflag, size = 0x4, scoped, tag = 'scoped memory for tpu_custom_call.1']
    #allocation7 [shape = 'u8[65536]{0}', space=vmem, size = 0x10000, scoped, tag = 'input window, operand 3, single buffered']
    #allocation8 [shape = 'u8[65536]{0}', space=vmem, size = 0x10000, scoped, tag = 'input window, operand 5, single buffered']
    #allocation9 [shape = 's32[1]{0}', space=sflag, size = 0x4, scoped, tag = 'scoped memory for tpu_custom_call.1']
    #allocation10 [shape = 'u8[512]{0}', space=vmem, size = 0x400, scoped, tag = 'output window, operand 0, single buffered']
    %12 = vsyncpa [#allocation3], 0
    %13 = vsyncpa [#allocation6], 0
    %14 = vsyncpa [#allocation9], 0
    %15 = vsyncpa [#allocation4], 0
    // Predicated region
    $region2: #{tpu_custom_call.1} parent=1 // pred_check
      _
    $region3: #{tpu_custom_call.1} parent=1 // pred_check_branch
      %17 = sbr.rel (0) target = $region5
    $region4: #{tpu_custom_call.1} parent=1 // pred_region
      %s19 = ssub.s32 128, 128
      %20 = vsyncadd [#allocation3], %s19
      %s22 = sshll.u32 [#allocation2], 4
      %s23 = int_to_ptr.vmem [resolvable:$true] %s22
      %25 = dma.hbm_to_vmem [thread:$0]  %s0, 128, %s23, [#allocation3]
    $region5: #{tpu_custom_call.1} parent=1 // pred_fallthru
      _
    // Predicated region
    $region6: #{tpu_custom_call.1} parent=1 // pred_check
      _
    $region7: #{tpu_custom_call.1} parent=1 // pred_check_branch
      %27 = sbr.rel (0) target = $region9
    $region8: #{tpu_custom_call.1} parent=1 // pred_region
      %s29 = ssub.s32 512, 512
      %30 = vsyncadd [#allocation6], %s29
      %s31 = sshll.u32 [#allocation5], 4
      %s32 = int_to_ptr.vmem [resolvable:$true] %s31
      %37 = dma.hbm_to_vmem [thread:$0]  %s1, 512, %s32, [#allocation6], 128, 128, 8
    $region9: #{tpu_custom_call.1} parent=1 // pred_fallthru
      _
    // Predicated region
    $region10: #{tpu_custom_call.1} parent=1 // pred_check
      _
    $region11: #{tpu_custom_call.1} parent=1 // pred_check_branch
      %39 = sbr.rel (0) target = $region13
    $region12: #{tpu_custom_call.1} parent=1 // pred_region
      _
    $region13: #{tpu_custom_call.1} parent=1 // pred_fallthru
      _
    // Predicated region
    $region14: #{tpu_custom_call.1} parent=1 // pred_check
      _
    $region15: #{tpu_custom_call.1} parent=1 // pred_check_branch
      %41 = sbr.rel (0) target = $region17
    $region16: #{tpu_custom_call.1} parent=1 // pred_region
      %s43 = ssub.s32 2048, 2048
      %44 = vsyncadd [#allocation6], %s43
      %s45 = sshll.u32 [#allocation7], 4
      %s46 = int_to_ptr.vmem [resolvable:$true] %s45
      %51 = dma.hbm_to_vmem [thread:$0]  %s3, 2048, %s46, [#allocation6], 128, 128, 8
    $region17: #{tpu_custom_call.1} parent=1 // pred_fallthru
      _
    // Predicated region
    $region18: #{tpu_custom_call.1} parent=1 // pred_check
      _
    $region19: #{tpu_custom_call.1} parent=1 // pred_check_branch
      %53 = sbr.rel (0) target = $region21
    $region20: #{tpu_custom_call.1} parent=1 // pred_region
      _
    $region21: #{tpu_custom_call.1} parent=1 // pred_fallthru
      _
    // Predicated region
    $region22: #{tpu_custom_call.1} parent=1 // pred_check
      _
    $region23: #{tpu_custom_call.1} parent=1 // pred_check_branch
      %55 = sbr.rel (0) target = $region25
    $region24: #{tpu_custom_call.1} parent=1 // pred_region
      %s57 = ssub.s32 2048, 2048
      %58 = vsyncadd [#allocation9], %s57
      %s59 = sshll.u32 [#allocation8], 4
      %s60 = int_to_ptr.vmem [resolvable:$true] %s59
      %65 = dma.hbm_to_vmem [thread:$0]  %s5, 2048, %s60, [#allocation9], 128, 128, 8
    $region25: #{tpu_custom_call.1} parent=1 // pred_fallthru
      _
    // Predicated region
    $region26: #{tpu_custom_call.1} parent=1 // pred_check
      _
    $region27: #{tpu_custom_call.1} parent=1 // pred_check_branch
      %67 = sbr.rel (0) target = $region29
    $region28: #{tpu_custom_call.1} parent=1 // pred_region
      _
    $region29: #{tpu_custom_call.1} parent=1 // pred_fallthru
      _
    // Predicated region
    $region30: #{tpu_custom_call.1} parent=1 // pred_check
      _
    $region31: #{tpu_custom_call.1} parent=1 // pred_check_branch
      %69 = sbr.rel (0) target = $region33
    $region32: #{tpu_custom_call.1} parent=1 // pred_region
      %70 = dma.done [#allocation3], 128
    $region33: #{tpu_custom_call.1} parent=1 // pred_fallthru
      _
    // Predicated region
    $region34: #{tpu_custom_call.1} parent=1 // pred_check
      _
    $region35: #{tpu_custom_call.1} parent=1 // pred_check_branch
      %72 = sbr.rel (0) target = $region37
    $region36: #{tpu_custom_call.1} parent=1 // pred_region
      %73 = dma.done [#allocation6], 512
    $region37: #{tpu_custom_call.1} parent=1 // pred_fallthru
      _
    // Predicated region
    $region38: #{tpu_custom_call.1} parent=1 // pred_check
      _
    $region39: #{tpu_custom_call.1} parent=1 // pred_check_branch
      %75 = sbr.rel (0) target = $region41
    $region40: #{tpu_custom_call.1} parent=1 // pred_region
      %76 = dma.done [#allocation6], 2048
    $region41: #{tpu_custom_call.1} parent=1 // pred_fallthru
      _
    // Predicated region
    $region42: #{tpu_custom_call.1} parent=1 // pred_check
      _
    $region43: #{tpu_custom_call.1} parent=1 // pred_check_branch
      %78 = sbr.rel (0) target = $region45
    $region44: #{tpu_custom_call.1} parent=1 // pred_region
      %79 = dma.done [#allocation9], 2048
    $region45: #{tpu_custom_call.1} parent=1 // pred_fallthru
      _
    %v80 = vld [vmem:[#allocation2] sm:$0xff]
    %v81 = vld [vmem:[#allocation5] sm:$0xff]
    %v82 = vld [vmem:[#allocation5 + $0x8] sm:$0xff]
    %v83 = vld [vmem:[#allocation5 + $0x10] sm:$0xff]
    %v84 = vld [vmem:[#allocation5 + $0x18] sm:$0xff]
    %v85 = vld [vmem:[%s2] sm:$0x1]
    %v87 = vlaneseq
    %v88 = vshrl.u32 %v87, 7
    %v89 = vsub.s32 0, %v88
    %v90 = vrot.slane %v85, %v89
    %vm92 = vcmask 261120
    %v94 = vsel %vm92, %v80, 0
    %96 = vmatprep.subr.mxu0 0.0
    %97 = vmatpush1.msra.mxu0 0.0
    %98 = vmatprep.subr.mxu0 0.0
    %99 = vmatpush1.msra.mxu0 0.0
    %100 = vmatprep.subr.mxu0 0.0
    %101 = vmatpush1.msra.mxu0 0.0
    %102 = vmatprep.subr.mxu0 0.0
    %103 = vmatpush1.msra.mxu0 0.0
    %104 = vmatprep.subr.mxu0 0.0
    %105 = vmatpush1.msra.mxu0 0.0
    %106 = vmatprep.subr.mxu0 0.0
    %107 = vmatpush1.msra.mxu0 0.0
    %108 = vmatprep.subr.mxu0 0.0
    %109 = vmatpush1.msra.mxu0 0.0
    %110 = vmatprep.subr.mxu0 0.0
    %111 = vmatpush1.msra.mxu0 0.0
    %112 = vmatprep.subr.mxu0 0.0
    %113 = vmatpush1.msra.mxu0 0.0
    %114 = vmatprep.subr.mxu0 0.0
    %115 = vmatpush1.msra.mxu0 0.0
    %116 = vmatprep.subr.mxu0 0.0
    %117 = vmatpush1.msra.mxu0 0.0
    %118 = vmatprep.subr.mxu0 0.0
    %119 = vmatpush1.msra.mxu0 0.0
    %120 = vmatprep.subr.mxu0 0.0
    %121 = vmatpush1.msra.mxu0 %v84
    %122 = vmatprep.subr.mxu0 0.0
    %123 = vmatpush1.msra.mxu0 %v83
    %124 = vmatprep.subr.mxu0 0.0
    %125 = vmatpush1.msra.mxu0 %v82
    %126 = vmatprep.subr.mxu0 0.0
    %127 = vmatpush1.msra.mxu0 %v81
    %128 = vmatprep.subr.mxu0 0.0
    %129 = vmatpush2.msra.mxu0 0.0
    %130 = vmatprep.subr.mxu0 0.0
    %131 = vmatpush2.msra.mxu0 0.0
    %132 = vmatprep.subr.mxu0 0.0
    %133 = vmatpush2.msra.mxu0 0.0
    %134 = vmatprep.subr.mxu0 0.0
    %135 = vmatpush2.msra.mxu0 0.0
    %136 = vmatprep.subr.mxu0 0.0
    %137 = vmatpush2.msra.mxu0 0.0
    %138 = vmatprep.subr.mxu0 0.0
    %139 = vmatpush2.msra.mxu0 0.0
    %140 = vmatprep.subr.mxu0 0.0
    %141 = vmatpush2.msra.mxu0 0.0
    %142 = vmatprep.subr.mxu0 0.0
    %143 = vmatpush2.msra.mxu0 0.0
    %144 = vmatprep.subr.mxu0 0.0
    %145 = vmatpush2.msra.mxu0 0.0
    %146 = vmatprep.subr.mxu0 0.0
    %147 = vmatpush2.msra.mxu0 0.0
    %148 = vmatprep.subr.mxu0 0.0
    %149 = vmatpush2.msra.mxu0 0.0
    %150 = vmatprep.subr.mxu0 0.0
    %151 = vmatpush2.msra.mxu0 0.0
    %152 = vmatprep.subr.mxu0 0.0
    %153 = vmatpush2.msra.mxu0 0.0
    %154 = vmatprep.subr.mxu0 0.0
    %155 = vmatpush2.msra.mxu0 0.0
    %156 = vmatprep.subr.mxu0 0.0
    %157 = vmatpush2.msra.mxu0 0.0
    %158 = vmatprep.subr.mxu0 0.0
    %159 = vmatpush2.msra.mxu0 0.0
    %160 = vmatprep.mubr.f32.mxu0 0.0
    %161 = vmatmul.mubr.f32.gmra.mxu0 %v94
    %v162 = vpop.f32.mrf.mxu0
    %v163 = vadd.f32 %v90, %v162
    %v164 = vpop.f32.mrf.mxu0
    %165 = vdwg.mxu0
    %v166 = vmax.f32 %v163, 0.0
    %v167 = vld [vmem:[#allocation7] sm:$0xff]
    %v168 = vld [vmem:[#allocation7 + $0x8] sm:$0xff]
    %v169 = vld [vmem:[#allocation7 + $0x10] sm:$0xff]
    %v170 = vld [vmem:[#allocation7 + $0x18] sm:$0xff]
    %v171 = vld [vmem:[#allocation7 + $0x20] sm:$0xff]
    %v172 = vld [vmem:[#allocation7 + $0x28] sm:$0xff]
    %v173 = vld [vmem:[#allocation7 + $0x30] sm:$0xff]
    %v174 = vld [vmem:[#allocation7 + $0x38] sm:$0xff]
    %v175 = vld [vmem:[#allocation7 + $0x40] sm:$0xff]
    %v176 = vld [vmem:[#allocation7 + $0x48] sm:$0xff]
    %v177 = vld [vmem:[#allocation7 + $0x50] sm:$0xff]
    %v178 = vld [vmem:[#allocation7 + $0x58] sm:$0xff]
    %v179 = vld [vmem:[#allocation7 + $0x60] sm:$0xff]
    %v180 = vld [vmem:[#allocation7 + $0x68] sm:$0xff]
    %v181 = vld [vmem:[#allocation7 + $0x70] sm:$0xff]
    %v182 = vld [vmem:[#allocation7 + $0x78] sm:$0xff]
    %v183 = vld [vmem:[%s4] sm:$0x1]
    %v185 = vlaneseq
    %v186 = vshrl.u32 %v185, 7
    %v187 = vsub.s32 0, %v186
    %v188 = vrot.slane %v183, %v187
    %190 = vmatprep.subr.mxu0 0.0
    %191 = vmatpush1.msra.mxu0 %v182
    %192 = vmatprep.subr.mxu0 0.0
    %193 = vmatpush1.msra.mxu0 %v181
    %194 = vmatprep.subr.mxu0 0.0
    %195 = vmatpush1.msra.mxu0 %v180
    %196 = vmatprep.subr.mxu0 0.0
    %197 = vmatpush1.msra.mxu0 %v179
    %198 = vmatprep.subr.mxu0 0.0
    %199 = vmatpush1.msra.mxu0 %v178
    %200 = vmatprep.subr.mxu0 0.0
    %201 = vmatpush1.msra.mxu0 %v177
    %202 = vmatprep.subr.mxu0 0.0
    %203 = vmatpush1.msra.mxu0 %v176
    %204 = vmatprep.subr.mxu0 0.0
    %205 = vmatpush1.msra.mxu0 %v175
    %206 = vmatprep.subr.mxu0 0.0
    %207 = vmatpush1.msra.mxu0 %v174
    %208 = vmatprep.subr.mxu0 0.0
    %209 = vmatpush1.msra.mxu0 %v173
    %210 = vmatprep.subr.mxu0 0.0
    %211 = vmatpush1.msra.mxu0 %v172
    %212 = vmatprep.subr.mxu0 0.0
    %213 = vmatpush1.msra.mxu0 %v171
    %214 = vmatprep.subr.mxu0 0.0
    %215 = vmatpush1.msra.mxu0 %v170
    %216 = vmatprep.subr.mxu0 0.0
    %217 = vmatpush1.msra.mxu0 %v169
    %218 = vmatprep.subr.mxu0 0.0
    %219 = vmatpush1.msra.mxu0 %v168
    %220 = vmatprep.subr.mxu0 0.0
    %221 = vmatpush1.msra.mxu0 %v167
    %222 = vmatprep.subr.mxu0 0.0
    %223 = vmatpush2.msra.mxu0 0.0
    %224 = vmatprep.subr.mxu0 0.0
    %225 = vmatpush2.msra.mxu0 0.0
    %226 = vmatprep.subr.mxu0 0.0
    %227 = vmatpush2.msra.mxu0 0.0
    %228 = vmatprep.subr.mxu0 0.0
    %229 = vmatpush2.msra.mxu0 0.0
    %230 = vmatprep.subr.mxu0 0.0
    %231 = vmatpush2.msra.mxu0 0.0
    %232 = vmatprep.subr.mxu0 0.0
    %233 = vmatpush2.msra.mxu0 0.0
    %234 = vmatprep.subr.mxu0 0.0
    %235 = vmatpush2.msra.mxu0 0.0
    %236 = vmatprep.subr.mxu0 0.0
    %237 = vmatpush2.msra.mxu0 0.0
    %238 = vmatprep.subr.mxu0 0.0
    %239 = vmatpush2.msra.mxu0 0.0
    %240 = vmatprep.subr.mxu0 0.0
    %241 = vmatpush2.msra.mxu0 0.0
    %242 = vmatprep.subr.mxu0 0.0
    %243 = vmatpush2.msra.mxu0 0.0
    %244 = vmatprep.subr.mxu0 0.0
    %245 = vmatpush2.msra.mxu0 0.0
    %246 = vmatprep.subr.mxu0 0.0
    %247 = vmatpush2.msra.mxu0 0.0
    %248 = vmatprep.subr.mxu0 0.0
    %249 = vmatpush2.msra.mxu0 0.0
    %250 = vmatprep.subr.mxu0 0.0
    %251 = vmatpush2.msra.mxu0 0.0
    %252 = vmatprep.subr.mxu0 0.0
    %253 = vmatpush2.msra.mxu0 0.0
    %254 = vmatprep.mubr.f32.mxu0 0.0
    %255 = vmatmul.mubr.f32.gmra.mxu0 %v166
    %v256 = vpop.f32.mrf.mxu0
    %v257 = vadd.f32 %v188, %v256
    %v258 = vpop.f32.mrf.mxu0
    %259 = vdwg.mxu0
    %v260 = vmax.f32 %v257, 0.0
    %v261 = vld [vmem:[#allocation8] sm:$0xff]
    %v262 = vld [vmem:[#allocation8 + $0x8] sm:$0xff]
    %v263 = vld [vmem:[#allocation8 + $0x10] sm:$0xff]
    %v264 = vld [vmem:[#allocation8 + $0x18] sm:$0xff]
    %v265 = vld [vmem:[#allocation8 + $0x20] sm:$0xff]
    %v266 = vld [vmem:[#allocation8 + $0x28] sm:$0xff]
    %v267 = vld [vmem:[#allocation8 + $0x30] sm:$0xff]
    %v268 = vld [vmem:[#allocation8 + $0x38] sm:$0xff]
    %v269 = vld [vmem:[#allocation8 + $0x40] sm:$0xff]
    %v270 = vld [vmem:[#allocation8 + $0x48] sm:$0xff]
    %v271 = vld [vmem:[#allocation8 + $0x50] sm:$0xff]
    %v272 = vld [vmem:[#allocation8 + $0x58] sm:$0xff]
    %v273 = vld [vmem:[#allocation8 + $0x60] sm:$0xff]
    %v274 = vld [vmem:[#allocation8 + $0x68] sm:$0xff]
    %v275 = vld [vmem:[#allocation8 + $0x70] sm:$0xff]
    %v276 = vld [vmem:[#allocation8 + $0x78] sm:$0xff]
    %v277 = vld [vmem:[%s6] sm:$0x1]
    %v279 = vlaneseq
    %v280 = vshrl.u32 %v279, 7
    %v281 = vsub.s32 0, %v280
    %v282 = vrot.slane %v277, %v281
    %284 = vmatprep.subr.mxu0 0.0
    %285 = vmatpush1.msra.mxu0 %v276
    %286 = vmatprep.subr.mxu0 0.0
    %287 = vmatpush1.msra.mxu0 %v275
    %288 = vmatprep.subr.mxu0 0.0
    %289 = vmatpush1.msra.mxu0 %v274
    %290 = vmatprep.subr.mxu0 0.0
    %291 = vmatpush1.msra.mxu0 %v273
    %292 = vmatprep.subr.mxu0 0.0
    %293 = vmatpush1.msra.mxu0 %v272
    %294 = vmatprep.subr.mxu0 0.0
    %295 = vmatpush1.msra.mxu0 %v271
    %296 = vmatprep.subr.mxu0 0.0
    %297 = vmatpush1.msra.mxu0 %v270
    %298 = vmatprep.subr.mxu0 0.0
    %299 = vmatpush1.msra.mxu0 %v269
    %300 = vmatprep.subr.mxu0 0.0
    %301 = vmatpush1.msra.mxu0 %v268
    %302 = vmatprep.subr.mxu0 0.0
    %303 = vmatpush1.msra.mxu0 %v267
    %304 = vmatprep.subr.mxu0 0.0
    %305 = vmatpush1.msra.mxu0 %v266
    %306 = vmatprep.subr.mxu0 0.0
    %307 = vmatpush1.msra.mxu0 %v265
    %308 = vmatprep.subr.mxu0 0.0
    %309 = vmatpush1.msra.mxu0 %v264
    %310 = vmatprep.subr.mxu0 0.0
    %311 = vmatpush1.msra.mxu0 %v263
    %312 = vmatprep.subr.mxu0 0.0
    %313 = vmatpush1.msra.mxu0 %v262
    %314 = vmatprep.subr.mxu0 0.0
    %315 = vmatpush1.msra.mxu0 %v261
    %316 = vmatprep.subr.mxu0 0.0
    %317 = vmatpush2.msra.mxu0 0.0
    %318 = vmatprep.subr.mxu0 0.0
    %319 = vmatpush2.msra.mxu0 0.0
    %320 = vmatprep.subr.mxu0 0.0
    %321 = vmatpush2.msra.mxu0 0.0
    %322 = vmatprep.subr.mxu0 0.0
    %323 = vmatpush2.msra.mxu0 0.0
    %324 = vmatprep.subr.mxu0 0.0
    %325 = vmatpush2.msra.mxu0 0.0
    %326 = vmatprep.subr.mxu0 0.0
    %327 = vmatpush2.msra.mxu0 0.0
    %328 = vmatprep.subr.mxu0 0.0
    %329 = vmatpush2.msra.mxu0 0.0
    %330 = vmatprep.subr.mxu0 0.0
    %331 = vmatpush2.msra.mxu0 0.0
    %332 = vmatprep.subr.mxu0 0.0
    %333 = vmatpush2.msra.mxu0 0.0
    %334 = vmatprep.subr.mxu0 0.0
    %335 = vmatpush2.msra.mxu0 0.0
    %336 = vmatprep.subr.mxu0 0.0
    %337 = vmatpush2.msra.mxu0 0.0
    %338 = vmatprep.subr.mxu0 0.0
    %339 = vmatpush2.msra.mxu0 0.0
    %340 = vmatprep.subr.mxu0 0.0
    %341 = vmatpush2.msra.mxu0 0.0
    %342 = vmatprep.subr.mxu0 0.0
    %343 = vmatpush2.msra.mxu0 0.0
    %344 = vmatprep.subr.mxu0 0.0
    %345 = vmatpush2.msra.mxu0 0.0
    %346 = vmatprep.subr.mxu0 0.0
    %347 = vmatpush2.msra.mxu0 0.0
    %348 = vmatprep.mubr.f32.mxu0 0.0
    %349 = vmatmul.mubr.f32.gmra.mxu0 %v260
    %v350 = vpop.f32.mrf.mxu0
    %v351 = vadd.f32 %v282, %v350
    %v352 = vpop.f32.mrf.mxu0
    %353 = vdwg.mxu0
    %354 = vxpose.xlu0.b32.start [1/16] %v351, 128
    %355 = vxpose.xlu0.b32.cont [2/16] 0.0, 128
    %356 = vxpose.xlu0.b32.cont [3/16] 0.0, 128
    %357 = vxpose.xlu0.b32.cont [4/16] 0.0, 128
    %358 = vxpose.xlu0.b32.cont [5/16] 0.0, 128
    %359 = vxpose.xlu0.b32.cont [6/16] 0.0, 128
    %360 = vxpose.xlu0.b32.cont [7/16] 0.0, 128
    %361 = vxpose.xlu0.b32.cont [8/16] 0.0, 128
    %362 = vxpose.xlu0.b32.cont [9/16] 0.0, 128
    %363 = vxpose.xlu0.b32.cont [10/16] 0.0, 128
    %364 = vxpose.xlu0.b32.cont [11/16] 0.0, 128
    %365 = vxpose.xlu0.b32.cont [12/16] 0.0, 128
    %366 = vxpose.xlu0.b32.cont [13/16] 0.0, 128
    %367 = vxpose.xlu0.b32.cont [14/16] 0.0, 128
    %368 = vxpose.xlu0.b32.cont [15/16] 0.0, 128
    %369 = vxpose.xlu0.b32.end [16/16] 0.0, 128
    %v370 = vpop.trf.xlu0
    %v371 = vpop.trf.xlu0
    %v372 = vpop.trf.xlu0
    %v373 = vpop.trf.xlu0
    %v374 = vpop.trf.xlu0
    %v375 = vpop.trf.xlu0
    %v376 = vpop.trf.xlu0
    %v377 = vpop.trf.xlu0
    %v378 = vpop.trf.xlu0
    %v379 = vpop.trf.xlu0
    %v380 = vpop.trf.xlu0
    %v381 = vpop.trf.xlu0
    %v382 = vpop.trf.xlu0
    %v383 = vpop.trf.xlu0
    %v384 = vpop.trf.xlu0
    %v385 = vpop.trf.xlu0
    %vm386 = vcmask 57344
    %387 = vst.msk [vmem:[#allocation10] sm:$0x1] %vm386, %v370
    // Predicated region
    $region46: #{tpu_custom_call.1} parent=1 // pred_check
      _
    $region47: #{tpu_custom_call.1} parent=1 // pred_check_branch
      %389 = sbr.rel (0) target = $region49
    $region48: #{tpu_custom_call.1} parent=1 // pred_region
      %s391 = ssub.s32 16, 16
      %392 = vsyncadd [#allocation4], %s391
      %s394 = sshll.u32 [#allocation10], 4
      %s395 = int_to_ptr.vmem [resolvable:$true] %s394
      %397 = dma.vmem_to_hbm [thread:$0]  %s395, 16, %s7, [#allocation4]
    $region49: #{tpu_custom_call.1} parent=1 // pred_fallthru
      _
    // Predicated region
    $region50: #{tpu_custom_call.1} parent=1 // pred_check
      _
    $region51: #{tpu_custom_call.1} parent=1 // pred_check_branch
      %399 = sbr.rel (0) target = $region53
    $region52: #{tpu_custom_call.1} parent=1 // pred_region
      %400 = dma.done [#allocation4], 16
    $region53: #{tpu_custom_call.1} parent=1 // pred_fallthru
      _
    %401 = vsyncpa [#allocation3], 1
    %402 = vsyncpa [#allocation6], 1
    %403 = vsyncpa [#allocation9], 1
    %404 = vsyncpa [#allocation4], 1

</llo_original>
